<compile_context>
chip_gen: v5e
topology: v5e:2x2
jax: 0.10.0
libtpu: 0.0.40
codegen_flags: <defaults>
</compile_context>

<pallas_src>
import jax
import jax.numpy as jnp
from jax import lax
from jax.experimental import pallas as pl
from jax.experimental.pallas import tpu as pltpu

_HIGH = lax.Precision.HIGHEST   # full-f32 matmul path (kernel AND reference)


def _softmax_lanes(x):
    """Softmax over the lane (last) axis of a (1, L) row."""
    m = jnp.max(x, axis=-1, keepdims=True)
    e = jnp.exp(x - m)
    # Exact reciprocal kept so the tight f32 parity check vs. the reference holds;
    # pl.reciprocal(..., approx=True) (EUP slot, ~free) is fine if ~1e-3 rel error
    # is acceptable.
    return e * pl.reciprocal(jnp.sum(e, axis=-1, keepdims=True), approx=False)


def _dot_kernel(q_ref, enc_ref, out_ref):
    q = q_ref[...]                                     # (1, H)
    enc = enc_ref[...]                                 # (L, H)
    # score (1, L) = q @ enc^T  (contract H on both; no explicit transpose)
    score = lax.dot_general(q, enc, (((1,), (1,)), ((), ())),
                            precision=_HIGH, preferred_element_type=jnp.float32)
    out_ref[...] = _softmax_lanes(score)


def _general_kernel(q_ref, enc_ref, w_ref, b_ref, out_ref):
    q = q_ref[...]                                     # (1, H)
    enc = enc_ref[...]                                 # (L, H)
    # Fold the Linear into the query side: qw[k] = sum_h q[h] * W[h, k]
    qw = lax.dot_general(q, w_ref[...], (((1,), (0,)), ((), ())),
                         precision=_HIGH, preferred_element_type=jnp.float32)     # (1, H)
    score = lax.dot_general(qw, enc, (((1,), (1,)), ((), ())),
                            precision=_HIGH, preferred_element_type=jnp.float32)  # (1, L)
    # Bias term sum_h q[h]*b[h] is constant over L; added once for exact parity.
    score = score + jnp.sum(q * b_ref[...], axis=-1, keepdims=True)
    out_ref[...] = _softmax_lanes(score)


def _concat_kernel(q_ref, enc_ref, wh_ref, we_ref, b_ref, v_ref, out_ref):
    q = q_ref[...]                                     # (1, H)
    enc = enc_ref[...]                                 # (L, H)
    # cat @ W^T == q @ Wh^T + enc @ We^T   (W = [Wh | We] split in the wrapper)
    qwh = lax.dot_general(q, wh_ref[...], (((1,), (1,)), ((), ())),
                          precision=_HIGH, preferred_element_type=jnp.float32)    # (1, H)
    ewe = lax.dot_general(enc, we_ref[...], (((1,), (1,)), ((), ())),
                          precision=_HIGH, preferred_element_type=jnp.float32)    # (L, H)
    energy = jnp.tanh(ewe + qwh + b_ref[...])          # (L, H)
    score = lax.dot_general(v_ref[...], energy, (((1,), (1,)), ((), ())),
                            precision=_HIGH, preferred_element_type=jnp.float32)  # (1, L)
    out_ref[...] = _softmax_lanes(score)


def attention_forward(method, hidden, encoder_output, params=None):
    """Pallas equivalent of Attention.forward.

    hidden:         (1, B, H) f32
    encoder_output: (L, B, H) f32
    returns:        (B, 1, L) f32  (softmax over L)
    """
    L, B, H = encoder_output.shape

    # Layout plumbing in the wrapper: B -> grid, L -> lanes, H contracted on MXU.
    enc_blh = jnp.transpose(encoder_output, (1, 0, 2))   # (B, L, H)
    q_b1h = jnp.transpose(hidden, (1, 0, 2))             # (B, 1, H)

    q_spec = pl.BlockSpec((None, 1, H), lambda b: (b, 0, 0))
    enc_spec = pl.BlockSpec((None, L, H), lambda b: (b, 0, 0))
    out_spec = pl.BlockSpec((None, 1, L), lambda b: (b, 0, 0))
    out_shape = jax.ShapeDtypeStruct((B, 1, L), jnp.float32)
    full2d = lambda shape: pl.BlockSpec(shape, lambda b: (0, 0))   # resident params

    if method == 'dot':
        kernel = _dot_kernel
        args = (q_b1h, enc_blh)
        in_specs = [q_spec, enc_spec]
    elif method == 'general':
        kernel = _general_kernel
        args = (q_b1h, enc_blh, params['w'], params['b'])
        in_specs = [q_spec, enc_spec, full2d((H, H)), full2d((1, H))]
    elif method == 'concat':
        kernel = _concat_kernel
        w = params['w']                                   # (H, 2H) = [Wh | We]
        args = (q_b1h, enc_blh, w[:, :H], w[:, H:], params['b'], params['v'])
        in_specs = [q_spec, enc_spec, full2d((H, H)), full2d((H, H)),
                    full2d((1, H)), full2d((1, H))]
    else:
        raise ValueError(method, 'should be dot,general or concat')

    # TODO(synk): for very large L (esp. v7x 64 MiB VMEM) tile L with a two-pass /
    #             online softmax (per-row max/sum scratch) instead of one (L, H)
    #             encoder block per batch row.
    return pl.pallas_call(
        kernel,
        out_shape=out_shape,
        grid=(B,),
        in_specs=in_specs,
        out_specs=out_spec,
        compiler_params=pltpu.CompilerParams(dimension_semantics=("parallel",)),
    )(*args)


def _reference_forward(method, hidden, enc, params=None):
    """Pure-JAX reference mirroring the PyTorch module exactly."""
    if method == 'dot':
        score = jnp.sum(hidden * enc, axis=2)
    elif method == 'general':
        energy = jnp.matmul(enc, params['w'].T, precision=_HIGH) + params['b']
        score = jnp.sum(hidden * energy, axis=2)
    else:
        h = jnp.broadcast_to(hidden, enc.shape)
        cat = jnp.concatenate([h, enc], axis=2)
        energy = jnp.tanh(jnp.matmul(cat, params['w'].T, precision=_HIGH) + params['b'])
        score = jnp.sum(params['v'] * energy, axis=2)
    score = score.T                                       # permute(1, 0)
    return jax.nn.softmax(score, axis=1)[:, None, :]      # unsqueeze(dim=1)


if __name__ == "__main__":
    B, L, H = 2, 8, 32     # batch, encoder seq len, hidden_size
    key = jax.random.PRNGKey(0)
    k_h, k_e, k_wg, k_bg, k_wc, k_bc, k_v = jax.random.split(key, 7)

    hidden = jax.random.normal(k_h, (1, B, H), dtype=jnp.float32)
    encoder_output = jax.random.normal(k_e, (L, B, H), dtype=jnp.float32)

    # Parameters (shapes from the module __init__); biases / v stored as (1, H)
    # rows for a TPU-friendly 2D layout (broadcasts identically to (H,)).
    params_general = {
        'w': 0.1 * jax.random.normal(k_wg, (H, H), dtype=jnp.float32),
        'b': 0.1 * jax.random.normal(k_bg, (1, H), dtype=jnp.float32),
    }
    params_concat = {
        'w': 0.1 * jax.random.normal(k_wc, (H, 2 * H), dtype=jnp.float32),
        'b': 0.1 * jax.random.normal(k_bc, (1, H), dtype=jnp.float32),
        'v': 0.1 * jax.random.normal(k_v, (1, H), dtype=jnp.float32),
    }

    cases = [
        ('dot', None),
        ('general', params_general),
        ('concat', params_concat),
    ]

    for method, params in cases:
        out = attention_forward(method, hidden, encoder_output, params)
        out = jax.block_until_ready(out)
        ref = _reference_forward(method, hidden, encoder_output, params)
        assert out.shape == (B, 1, L), (method, out.shape)
        # 1e-4: the algebraic refactor ('general' fold, 'concat' split) changes the
        # f32 rounding order slightly vs. the reference; math is identical.
        assert jnp.allclose(out, ref, atol=1e-4, rtol=1e-4), method
        # softmax rows sum to 1
        assert jnp.allclose(jnp.sum(out, axis=-1), 1.0, atol=1e-5), method

    print("KERNEL_OK")
</pallas_src>

<mosaic_0001>
module attributes {stable_mosaic.version = 11 : i64} {
  func.func @_dot_kernel(%arg0: i32, %arg1: memref<1x1x32xf32, #tpu.memory_space<vmem>>, %arg2: memref<1x8x32xf32, #tpu.memory_space<vmem>>, %arg3: memref<1x1x8xf32, #tpu.memory_space<vmem>>) attributes {dimension_semantics = [#tpu.dimension_semantics<parallel>], iteration_bounds = array<i64: 2>, scalar_prefetch = 0 : i64, scratch_operands = 0 : i64, tpu.core_type = #tpu.core_type<tc>, window_params = [{transform_indices = @transform_0, window_bounds = array<i64: 1, 1, 32>}, {transform_indices = @transform_1, window_bounds = array<i64: 1, 8, 32>}, {transform_indices = @transform_2, window_bounds = array<i64: 1, 1, 8>}]} {
    %c0 = arith.constant 0 : index
    %c0_0 = arith.constant 0 : index
    %c0_1 = arith.constant 0 : index
    %0 = vector.load %arg1[%c0, %c0_0, %c0_1] : memref<1x1x32xf32, #tpu.memory_space<vmem>>, vector<1x1x32xf32>
    %1 = vector.shape_cast %0 : vector<1x1x32xf32> to vector<1x32xf32>
    %c0_2 = arith.constant 0 : index
    %c0_3 = arith.constant 0 : index
    %c0_4 = arith.constant 0 : index
    %2 = vector.load %arg2[%c0_2, %c0_3, %c0_4] : memref<1x8x32xf32, #tpu.memory_space<vmem>>, vector<1x8x32xf32>
    %3 = vector.shape_cast %2 : vector<1x8x32xf32> to vector<8x32xf32>
    %cst = arith.constant dense<0.000000e+00> : vector<1x8xf32>
    %4 = tpu.matmul %1, %3, %cst {dimension_numbers = #tpu.dot_dimension_numbers<[1], [1], [0], [0], [0, 0, 1, 0], [], []>, precision = #tpu.contract_precision<fp32>} : vector<1x32xf32>, vector<8x32xf32>, vector<1x8xf32> -> vector<1x8xf32>
    %cst_5 = arith.constant dense<0xFF800000> : vector<1xf32>
    %5 = vector.multi_reduction <maximumf>, %4, %cst_5 [1] : vector<1x8xf32> to vector<1xf32>
    %6 = vector.shape_cast %5 : vector<1xf32> to vector<1x1xf32>
    %7 = vector.broadcast %6 : vector<1x1xf32> to vector<1x8xf32>
    %8 = arith.subf %4, %7 : vector<1x8xf32>
    %9 = math.exp %8 : vector<1x8xf32>
    %cst_6 = arith.constant dense<0.000000e+00> : vector<1xf32>
    %10 = vector.multi_reduction <add>, %9, %cst_6 [1] : vector<1x8xf32> to vector<1xf32>
    %11 = vector.shape_cast %10 : vector<1xf32> to vector<1x1xf32>
    %12 = tpu.reciprocal %11 : vector<1x1xf32> -> vector<1x1xf32>
    %13 = vector.broadcast %12 : vector<1x1xf32> to vector<1x8xf32>
    %14 = arith.mulf %9, %13 : vector<1x8xf32>
    %c0_7 = arith.constant 0 : index
    %c0_8 = arith.constant 0 : index
    %c0_9 = arith.constant 0 : index
    %15 = vector.load %arg3[%c0_7, %c0_8, %c0_9] : memref<1x1x8xf32, #tpu.memory_space<vmem>>, vector<1x1x8xf32>
    %16 = vector.shape_cast %15 : vector<1x1x8xf32> to vector<1x8xf32>
    %17 = vector.shape_cast %14 : vector<1x8xf32> to vector<1x1x8xf32>
    tpu.vector_store %arg3[%c0_7, %c0_8, %c0_9], %17 {strides = array<i32>} : memref<1x1x8xf32, #tpu.memory_space<vmem>>, vector<1x1x8xf32>,
    return
  }
  func.func @transform_0(%arg0: i32) -> (i32, i32, i32) {
    %c0_i32 = arith.constant 0 : i32
    %c0_i32_0 = arith.constant 0 : i32
    %c0_i32_1 = arith.constant 0 : i32
    return %arg0, %c0_i32, %c0_i32_0 : i32, i32, i32
  }
  func.func @transform_1(%arg0: i32) -> (i32, i32, i32) {
    %c0_i32 = arith.constant 0 : i32
    %c0_i32_0 = arith.constant 0 : i32
    %c0_i32_1 = arith.constant 0 : i32
    return %arg0, %c0_i32, %c0_i32_0 : i32, i32, i32
  }
  func.func @transform_2(%arg0: i32) -> (i32, i32, i32) {
    %c0_i32 = arith.constant 0 : i32
    %c0_i32_0 = arith.constant 0 : i32
    %c0_i32_1 = arith.constant 0 : i32
    return %arg0, %c0_i32, %c0_i32_0 : i32, i32, i32
  }
}

</mosaic_0001>

<llo_original>
// kernel: tpu_custom_call.1
$region0: #{tpu_custom_call.1}
  #allocation0 [shape = 'u32[]', space=smem, size = 0x4, offset = 0x4, fixed_abs, tag = 'smem constant byte address 0x4 - core index']
  #allocation1 [shape = 'u32[72,128]{1,0:T(1,128)}', space=vmem, size = 0x9000, scoped, tag = 'internal scratch']
  %s0 = inlined_call_operand.hbm [shape: f32[2,1,32], index: 0, kind: input, shape index: {}]
  %s1 = inlined_call_operand.hbm [shape: f32[2,8,32], index: 1, kind: input, shape index: {}]
  %s2 = inlined_call_operand.hbm [shape: f32[2,1,8], index: 2, kind: output, shape index: {}]
  %s3 = sld [smem:[#allocation0]]
  $region49: #{tpu_custom_call.1} parent=0
    _
  %s5 = ssub.s32 1, %s3
  %s6 = scalar_select 0, %s5, %s3
  $region1: #{tpu_custom_call.1} parent=0
    #allocation2 [shape = 'u8[1024]{0}', space=vmem, size = 0x400, scoped, tag = 'input window, operand 0']
    #allocation3 [shape = 's32[2]{0}', space=sflag, size = 0x8, scoped, tag = 'scoped memory for tpu_custom_call.1']
    #allocation4 [shape = 's32[2]{0}', space=sflag, size = 0x8, scoped, tag = 'scoped memory for tpu_custom_call.1']
    #allocation5 [shape = 'u8[8192]{0}', space=vmem, size = 0x2000, scoped, tag = 'input window, operand 1']
    #allocation6 [shape = 's32[2]{0}', space=sflag, size = 0x8, scoped, tag = 'scoped memory for tpu_custom_call.1']
    #allocation7 [shape = 'u8[1024]{0}', space=vmem, size = 0x400, scoped, tag = 'output window, operand 0']
    %7 = vsyncpa [#allocation3], 0
    %s8 = scalar_lea.sflag [#allocation3], 1
    %9 = vsyncpa %s8, 0
    %10 = vsyncpa [#allocation6], 0
    %s11 = scalar_lea.sflag [#allocation6], 1
    %12 = vsyncpa %s11, 0
    %13 = vsyncpa [#allocation4], 0
    %s14 = scalar_lea.sflag [#allocation4], 1
    %15 = vsyncpa %s14, 0
    loop: start=0, step=1, limit=4
    $region2: #{tpu_custom_call.1} parent=1 // loop_pre_header
      _
    $region3: #{tpu_custom_call.1} parent=1 // loop_header
      %s17 = sphi 0, %s21
      %p18 = scmp.ge.s32.totalorder %s17, 4
      %s27 = sphi 0, %s29
      %s30 = sphi 0, %s27
      %s31 = sphi 0, %s30
      %s47 = sphi 0, %s31
      %s53 = sphi 0, %s55
      %s56 = sphi 0, %s53
      %s57 = sphi 0, %s56
      %s73 = sphi 0, %s57
      %s79 = sphi 0, %s81
      %s82 = sphi 0, %s79
      %s83 = sphi 0, %s82
      %s99 = sphi 0, %s83
    $region4: #{tpu_custom_call.1} parent=1 // loop_header_branch
      %20 = sbr.rel (%p18) target = $region8
    $region5: #{tpu_custom_call.1} parent=1 // loop_body
      %s22 = ssub.s32 %s17, 1
      %s23 = ssub.s32 %s17, 2
      %s24 = sadd.s32 %s17, 1
      %s25 = ssub.s32 %s17, %s24
      %p26 = scmp.eq.s32.totalorder %s25, 0
      %s28 = sadd.s32 %s27, 1
      %s29 = scalar_select %p26, %s27, %s28
      %p32 = pneg %p26
      %p33 = scmp.eq.s32.totalorder %s17, 1
      %p34 = por %p32, %p33
      %p35 = scmp.ne.s32.totalorder %s27, %s30
      %p36 = scmp.eq.s32.totalorder %s17, 0
      %p37 = por %p35, %p36
      %p38 = scmp.ne.s32.totalorder %s27, %s30
      %p39 = scmp.eq.s32.totalorder %s22, 1
      %p40 = por %p38, %p39
      %p41 = scmp.ne.s32.totalorder %s30, %s31
      %p42 = scmp.eq.s32.totalorder %s22, 0
      %p43 = por %p41, %p42
      %p44 = scmp.ne.s32.totalorder %s30, %s31
      %p45 = scmp.eq.s32.totalorder %s23, 1
      %p46 = por %p44, %p45
      %p48 = scmp.ne.s32.totalorder %s31, %s47
      %p49 = scmp.eq.s32.totalorder %s23, 0
      %p50 = por %p48, %p49
      %s51 = ssub.s32 %s17, %s24
      %p52 = scmp.eq.s32.totalorder %s51, 0
      %s54 = sadd.s32 %s53, 1
      %s55 = scalar_select %p52, %s53, %s54
      %p58 = pneg %p52
      %p59 = scmp.eq.s32.totalorder %s17, 1
      %p60 = por %p58, %p59
      %p61 = scmp.ne.s32.totalorder %s53, %s56
      %p62 = scmp.eq.s32.totalorder %s17, 0
      %p63 = por %p61, %p62
      %p64 = scmp.ne.s32.totalorder %s53, %s56
      %p65 = scmp.eq.s32.totalorder %s22, 1
      %p66 = por %p64, %p65
      %p67 = scmp.ne.s32.totalorder %s56, %s57
      %p68 = scmp.eq.s32.totalorder %s22, 0
      %p69 = por %p67, %p68
      %p70 = scmp.ne.s32.totalorder %s56, %s57
      %p71 = scmp.eq.s32.totalorder %s23, 1
      %p72 = por %p70, %p71
      %p74 = scmp.ne.s32.totalorder %s57, %s73
      %p75 = scmp.eq.s32.totalorder %s23, 0
      %p76 = por %p74, %p75
      %s77 = ssub.s32 %s17, %s24
      %p78 = scmp.eq.s32.totalorder %s77, 0
      %s80 = sadd.s32 %s79, 1
      %s81 = scalar_select %p78, %s79, %s80
      %p84 = pneg %p78
      %p85 = scmp.eq.s32.totalorder %s17, 1
      %p86 = por %p84, %p85
      %p87 = scmp.ne.s32.totalorder %s79, %s82
      %p88 = scmp.eq.s32.totalorder %s17, 0
      %p89 = por %p87, %p88
      %p90 = scmp.ne.s32.totalorder %s79, %s82
      %p91 = scmp.eq.s32.totalorder %s22, 1
      %p92 = por %p90, %p91
      %p93 = scmp.ne.s32.totalorder %s82, %s83
      %p94 = scmp.eq.s32.totalorder %s22, 0
      %p95 = por %p93, %p94
      %p96 = scmp.ne.s32.totalorder %s82, %s83
      %p97 = scmp.eq.s32.totalorder %s23, 1
      %p98 = por %p96, %p97
      %p100 = scmp.ne.s32.totalorder %s83, %s99
      %p101 = scmp.eq.s32.totalorder %s23, 0
      %p102 = por %p100, %p101
      %p103 = scmp.le.s32.totalorder 1, %s17
      %p104 = scmp.lt.s32.totalorder %s17, 3
      %p105 = pnand %p103, %p104
      %p106 = pneg %p105
      // Predicated region
      $region9: #{tpu_custom_call.1} parent=5 // pred_check
        _
      $region10: #{tpu_custom_call.1} parent=5 // pred_check_branch
        %108 = sbr.rel (%p105) target = $region12
      $region11: #{tpu_custom_call.1} parent=5 // pred_region
        %s109 = ssub.s32 %s17, 1
      $region12: #{tpu_custom_call.1} parent=5 // pred_fallthru
        _
      %p110 = scmp.lt.s32.totalorder %s17, 2
      // Predicated region
      $region13: #{tpu_custom_call.1} parent=5 // pred_check
        %p111 = pneg %p110
      $region14: #{tpu_custom_call.1} parent=5 // pred_check_branch
        %113 = sbr.rel (%p111) target = $region16
      $region15: #{tpu_custom_call.1} parent=5 // pred_region
        // Predicated region
        $region17: #{tpu_custom_call.1} parent=15 // pred_check
          %p114 = pneg %p37
        $region18: #{tpu_custom_call.1} parent=15 // pred_check_branch
          %116 = sbr.rel (%p114) target = $region20
        $region19: #{tpu_custom_call.1} parent=15 // pred_region
          %s117 = sand.u32 %s27, 1
          %s118 = scalar_lea.sflag [#allocation3], %s117
          %s119 = sand.u32 %s27, 1
          %s120 = scalar_lea.vmem [#allocation2], %s119
          %122 = vsyncadd %s118, 0
          %s123 = scalar_lea.hbm %s0, %s17
          %s125 = sshll.u32 %s123, 4
          %s126 = int_to_ptr.hbm [resolvable:$true] %s125
          %s127 = sshll.u32 %s120, 4
          %s128 = int_to_ptr.vmem [resolvable:$true] %s127
          %130 = dma.hbm_to_vmem [thread:$0]  %s126, 16, %s128, %s118
        $region20: #{tpu_custom_call.1} parent=15 // pred_fallthru
          _
        // Predicated region
        $region21: #{tpu_custom_call.1} parent=15 // pred_check
          %p131 = pneg %p63
        $region22: #{tpu_custom_call.1} parent=15 // pred_check_branch
          %133 = sbr.rel (%p131) target = $region24
        $region23: #{tpu_custom_call.1} parent=15 // pred_region
          %s134 = sand.u32 %s53, 1
          %s135 = scalar_lea.sflag [#allocation6], %s134
          %s136 = sand.u32 %s53, 1
          %s137 = smul.addr %s136, 8
          %s138 = scalar_lea.vmem [#allocation5], %s137
          %140 = vsyncadd %s135, 0
          %s141 = smul.addr %s17, 8
          %s142 = scalar_lea.hbm %s1, %s141
          %s144 = sshll.u32 %s142, 4
          %s145 = int_to_ptr.hbm [resolvable:$true] %s144
          %s146 = sshll.u32 %s138, 4
          %s147 = int_to_ptr.vmem [resolvable:$true] %s146
          %149 = dma.hbm_to_vmem [thread:$0]  %s145, 128, %s147, %s135
        $region24: #{tpu_custom_call.1} parent=15 // pred_fallthru
          _
      $region16: #{tpu_custom_call.1} parent=5 // pred_fallthru
        _
      %p150 = scmp.le.s32.totalorder 1, %s17
      %p151 = scmp.lt.s32.totalorder %s17, 3
      %p152 = pnand %p150, %p151
      %p153 = pneg %p152
      // Predicated region
      $region25: #{tpu_custom_call.1} parent=5 // pred_check
        _
      $region26: #{tpu_custom_call.1} parent=5 // pred_check_branch
        %155 = sbr.rel (%p152) target = $region28
      $region27: #{tpu_custom_call.1} parent=5 // pred_region
        %s156 = ssub.s32 %s17, 1
        %s157 = sand.u32 %s30, 1
        %s158 = scalar_lea.sflag [#allocation3], %s157
        %s159 = sand.u32 %s30, 1
        %s160 = scalar_lea.vmem [#allocation2], %s159
        // Predicated region
        $region29: #{tpu_custom_call.1} parent=27 // pred_check
          %p161 = pneg %p43
        $region30: #{tpu_custom_call.1} parent=27 // pred_check_branch
          %163 = sbr.rel (%p161) target = $region32
        $region31: #{tpu_custom_call.1} parent=27 // pred_region
          %165 = dma.done %s158, 16
        $region32: #{tpu_custom_call.1} parent=27 // pred_fallthru
          _
        %s166 = sand.u32 %s56, 1
        %s167 = scalar_lea.sflag [#allocation6], %s166
        %s168 = sand.u32 %s56, 1
        %s169 = smul.addr %s168, 8
        %s170 = scalar_lea.vmem [#allocation5], %s169
        // Predicated region
        $region33: #{tpu_custom_call.1} parent=27 // pred_check
          %p171 = pneg %p69
        $region34: #{tpu_custom_call.1} parent=27 // pred_check_branch
          %173 = sbr.rel (%p171) target = $region36
        $region35: #{tpu_custom_call.1} parent=27 // pred_region
          %175 = dma.done %s167, 128
        $region36: #{tpu_custom_call.1} parent=27 // pred_fallthru
          _
        %s176 = sand.u32 %s30, 1
        %s177 = scalar_lea.sflag [#allocation3], %s176
        %s178 = sand.u32 %s30, 1
        %s179 = scalar_lea.vmem [#allocation2], %s178
        %p180 = pneg %p43
        %p181 = pneg %p40
        %s182 = sand.u32 %s56, 1
        %s183 = scalar_lea.sflag [#allocation6], %s182
        %s184 = sand.u32 %s56, 1
        %s185 = smul.addr %s184, 8
        %s186 = scalar_lea.vmem [#allocation5], %s185
        %p187 = pneg %p69
        %p188 = pneg %p66
        %p189 = pneg %p95
        %p190 = pneg %p92
        %s191 = sand.u32 %s82, 1
        %s192 = scalar_lea.sflag [#allocation4], %s191
        %s193 = sand.u32 %s82, 1
        %s194 = scalar_lea.vmem [#allocation7], %s193
        %v195 = vld [vmem:[%s160] sm:$0x1]
        %v196 = vld [vmem:[%s170] sm:$0xff]
        %vm197 = vcmask 261120
        %v199 = vsel %vm197, %v195, 0
        %v202 = vsel %vm197, %v196, 0
        %204 = vmatpush.xpose.msra.mxu0 0.0
        %205 = vmatpush.xpose.msra.mxu0 0.0
        %206 = vmatpush.xpose.msra.mxu0 0.0
        %207 = vmatpush.xpose.msra.mxu0 0.0
        %208 = vmatpush.xpose.msra.mxu0 0.0
        %209 = vmatpush.xpose.msra.mxu0 0.0
        %210 = vmatpush.xpose.msra.mxu0 0.0
        %211 = vmatpush.xpose.msra.mxu0 0.0
        %212 = vmatpush.xpose.msra.mxu0 0.0
        %213 = vmatpush.xpose.msra.mxu0 0.0
        %214 = vmatpush.xpose.msra.mxu0 0.0
        %215 = vmatpush.xpose.msra.mxu0 0.0
        %216 = vmatpush.xpose.msra.mxu0 0.0
        %217 = vmatpush.xpose.msra.mxu0 0.0
        %218 = vmatpush.xpose.msra.mxu0 0.0
        %v219 = vand.u32 %v202, 4294901760
        %220 = vmatpush.xpose.msra.mxu0 %v219
        %v221 = vand.u32 %v199, 4294901760
        %v222 = vsub.f32 %v199, %v221
        %v223 = vand.u32 %v222, 4294901760
        %v224 = vsub.f32 %v222, %v223
        %v225 = vand.u32 %v224, 4294901760
        %226 = vmatmul.f32.gmra.mxu0 %v225
        %v227 = vpop.f32.mrf.mxu0
        %v228 = vadd.f32 0.0, %v227
        %229 = vdwg.mxu0
        %230 = vmatpush.xpose.msra.mxu0 0.0
        %231 = vmatpush.xpose.msra.mxu0 0.0
        %232 = vmatpush.xpose.msra.mxu0 0.0
        %233 = vmatpush.xpose.msra.mxu0 0.0
        %234 = vmatpush.xpose.msra.mxu0 0.0
        %235 = vmatpush.xpose.msra.mxu0 0.0
        %236 = vmatpush.xpose.msra.mxu0 0.0
        %237 = vmatpush.xpose.msra.mxu0 0.0
        %238 = vmatpush.xpose.msra.mxu0 0.0
        %239 = vmatpush.xpose.msra.mxu0 0.0
        %240 = vmatpush.xpose.msra.mxu0 0.0
        %241 = vmatpush.xpose.msra.mxu0 0.0
        %242 = vmatpush.xpose.msra.mxu0 0.0
        %243 = vmatpush.xpose.msra.mxu0 0.0
        %244 = vmatpush.xpose.msra.mxu0 0.0
        %v245 = vand.u32 %v202, 4294901760
        %v246 = vsub.f32 %v202, %v245
        %v247 = vand.u32 %v246, 4294901760
        %v248 = vsub.f32 %v246, %v247
        %v249 = vand.u32 %v248, 4294901760
        %250 = vmatpush.xpose.msra.mxu0 %v249
        %v251 = vand.u32 %v199, 4294901760
        %252 = vmatmul.f32.gmra.mxu0 %v251
        %v253 = vpop.f32.mrf.mxu0
        %v254 = vadd.f32 %v228, %v253
        %255 = vdwg.mxu0
        %256 = vmatpush.xpose.msra.mxu0 0.0
        %257 = vmatpush.xpose.msra.mxu0 0.0
        %258 = vmatpush.xpose.msra.mxu0 0.0
        %259 = vmatpush.xpose.msra.mxu0 0.0
        %260 = vmatpush.xpose.msra.mxu0 0.0
        %261 = vmatpush.xpose.msra.mxu0 0.0
        %262 = vmatpush.xpose.msra.mxu0 0.0
        %263 = vmatpush.xpose.msra.mxu0 0.0
        %264 = vmatpush.xpose.msra.mxu0 0.0
        %265 = vmatpush.xpose.msra.mxu0 0.0
        %266 = vmatpush.xpose.msra.mxu0 0.0
        %267 = vmatpush.xpose.msra.mxu0 0.0
        %268 = vmatpush.xpose.msra.mxu0 0.0
        %269 = vmatpush.xpose.msra.mxu0 0.0
        %270 = vmatpush.xpose.msra.mxu0 0.0
        %v271 = vand.u32 %v202, 4294901760
        %v272 = vsub.f32 %v202, %v271
        %273 = vmatpush.xpose.msra.mxu0 %v272
        %v274 = vand.u32 %v199, 4294901760
        %v275 = vsub.f32 %v199, %v274
        %276 = vmatmul.f32.gmra.mxu0 %v275
        %v277 = vpop.f32.mrf.mxu0
        %v278 = vadd.f32 %v254, %v277
        %279 = vdwg.mxu0
        %280 = vmatpush.xpose.msra.mxu0 0.0
        %281 = vmatpush.xpose.msra.mxu0 0.0
        %282 = vmatpush.xpose.msra.mxu0 0.0
        %283 = vmatpush.xpose.msra.mxu0 0.0
        %284 = vmatpush.xpose.msra.mxu0 0.0
        %285 = vmatpush.xpose.msra.mxu0 0.0
        %286 = vmatpush.xpose.msra.mxu0 0.0
        %287 = vmatpush.xpose.msra.mxu0 0.0
        %288 = vmatpush.xpose.msra.mxu0 0.0
        %289 = vmatpush.xpose.msra.mxu0 0.0
        %290 = vmatpush.xpose.msra.mxu0 0.0
        %291 = vmatpush.xpose.msra.mxu0 0.0
        %292 = vmatpush.xpose.msra.mxu0 0.0
        %293 = vmatpush.xpose.msra.mxu0 0.0
        %294 = vmatpush.xpose.msra.mxu0 0.0
        %v295 = vand.u32 %v202, 4294901760
        %296 = vmatpush.xpose.msra.mxu0 %v295
        %v297 = vand.u32 %v199, 4294901760
        %v298 = vsub.f32 %v199, %v297
        %v299 = vand.u32 %v298, 4294901760
        %300 = vmatmul.f32.gmra.mxu0 %v299
        %v301 = vpop.f32.mrf.mxu0
        %v302 = vadd.f32 %v278, %v301
        %303 = vdwg.mxu0
        %304 = vmatpush.xpose.msra.mxu0 0.0
        %305 = vmatpush.xpose.msra.mxu0 0.0
        %306 = vmatpush.xpose.msra.mxu0 0.0
        %307 = vmatpush.xpose.msra.mxu0 0.0
        %308 = vmatpush.xpose.msra.mxu0 0.0
        %309 = vmatpush.xpose.msra.mxu0 0.0
        %310 = vmatpush.xpose.msra.mxu0 0.0
        %311 = vmatpush.xpose.msra.mxu0 0.0
        %312 = vmatpush.xpose.msra.mxu0 0.0
        %313 = vmatpush.xpose.msra.mxu0 0.0
        %314 = vmatpush.xpose.msra.mxu0 0.0
        %315 = vmatpush.xpose.msra.mxu0 0.0
        %316 = vmatpush.xpose.msra.mxu0 0.0
        %317 = vmatpush.xpose.msra.mxu0 0.0
        %318 = vmatpush.xpose.msra.mxu0 0.0
        %v319 = vand.u32 %v202, 4294901760
        %v320 = vsub.f32 %v202, %v319
        %v321 = vand.u32 %v320, 4294901760
        %322 = vmatpush.xpose.msra.mxu0 %v321
        %v323 = vand.u32 %v199, 4294901760
        %324 = vmatmul.f32.gmra.mxu0 %v323
        %v325 = vpop.f32.mrf.mxu0
        %v326 = vadd.f32 %v302, %v325
        %327 = vdwg.mxu0
        %328 = vmatpush.xpose.msra.mxu0 0.0
        %329 = vmatpush.xpose.msra.mxu0 0.0
        %330 = vmatpush.xpose.msra.mxu0 0.0
        %331 = vmatpush.xpose.msra.mxu0 0.0
        %332 = vmatpush.xpose.msra.mxu0 0.0
        %333 = vmatpush.xpose.msra.mxu0 0.0
        %334 = vmatpush.xpose.msra.mxu0 0.0
        %335 = vmatpush.xpose.msra.mxu0 0.0
        %336 = vmatpush.xpose.msra.mxu0 0.0
        %337 = vmatpush.xpose.msra.mxu0 0.0
        %338 = vmatpush.xpose.msra.mxu0 0.0
        %339 = vmatpush.xpose.msra.mxu0 0.0
        %340 = vmatpush.xpose.msra.mxu0 0.0
        %341 = vmatpush.xpose.msra.mxu0 0.0
        %342 = vmatpush.xpose.msra.mxu0 0.0
        %v343 = vand.u32 %v202, 4294901760
        %344 = vmatpush.xpose.msra.mxu0 %v343
        %v345 = vand.u32 %v199, 4294901760
        %346 = vmatmul.f32.gmra.mxu0 %v345
        %v347 = vpop.f32.mrf.mxu0
        %v348 = vadd.f32 %v326, %v347
        %349 = vdwg.mxu0
        %vm350 = vcmask 57344
        %v351 = vsel %vm350, %v348, -inf
        %352 = vmax.xlane.f32.xlu0 %v351
        %v353 = vpop.xlane.xlu0 %352
        %v354 = vsub.f32 %v348, %v353
        %v355 = vmul.f32 %v354, 1.442695
        %v356 = vpow.pop %v355
        %v357 = vsel %vm350, %v356, 0.0
        %358 = vadd.xlane.f32.xlu0 %v357
        %v359 = vpop.xlane.xlu0 %358
        %v360 = vrcp.pop %v359
        %v361 = vmul.f32 %v359, %v360
        %v362 = vsub.f32 1.0, %v361
        %v363 = vmul.f32 %v360, %v362
        %v364 = vadd.f32 %v360, %v363
        %vm365 = vweird.f32 %v359
        %vm366 = vweird.f32 %v360
        %vm367 = vmor %vm365, %vm366
        %v368 = vsel %vm367, %v360, %v364
        %v369 = vand.u32 2147483647, %v359
        %vm370 = vcmp.eq.f32.partialorder %v369, 8.507059e+37
        %v371 = vand.u32 %v359, 2147483648
        %v372 = vor.u32 1.1754944e-38, %v371
        %v373 = vsel %vm370, %v372, %v368
        %v374 = vmul.f32 %v356, %v373
        %375 = vst.msk [vmem:[%s194] sm:$0x1] %vm350, %v374
        %s376 = sand.u32 %s82, 1
        %s377 = scalar_lea.sflag [#allocation4], %s376
        %s378 = sand.u32 %s82, 1
        %s379 = scalar_lea.vmem [#allocation7], %s378
        // Predicated region
        $region37: #{tpu_custom_call.1} parent=27 // pred_check
          %p380 = pneg %p92
        $region38: #{tpu_custom_call.1} parent=27 // pred_check_branch
          %382 = sbr.rel (%p380) target = $region40
        $region39: #{tpu_custom_call.1} parent=27 // pred_region
          %384 = vsyncadd %s377, 0
          %s385 = scalar_lea.hbm %s2, %s22
          %s387 = sshll.u32 %s379, 4
          %s388 = int_to_ptr.vmem [resolvable:$true] %s387
          %s389 = sshll.u32 %s385, 4
          %s390 = int_to_ptr.hbm [resolvable:$true] %s389
          %392 = dma.vmem_to_hbm [thread:$0]  %s388, 16, %s390, %s377
        $region40: #{tpu_custom_call.1} parent=27 // pred_fallthru
          _
      $region28: #{tpu_custom_call.1} parent=5 // pred_fallthru
        _
      %p393 = scmp.le.s32.totalorder 2, %s17
      // Predicated region
      $region41: #{tpu_custom_call.1} parent=5 // pred_check
        %p394 = pneg %p393
      $region42: #{tpu_custom_call.1} parent=5 // pred_check_branch
        %396 = sbr.rel (%p394) target = $region44
      $region43: #{tpu_custom_call.1} parent=5 // pred_region
        %s397 = ssub.s32 %s17, 2
        // Predicated region
        $region45: #{tpu_custom_call.1} parent=43 // pred_check
          %p398 = pneg %p98
        $region46: #{tpu_custom_call.1} parent=43 // pred_check_branch
          %400 = sbr.rel (%p398) target = $region48
        $region47: #{tpu_custom_call.1} parent=43 // pred_region
          %s401 = sand.u32 %s83, 1
          %s402 = scalar_lea.sflag [#allocation4], %s401
          %s403 = sand.u32 %s83, 1
          %s404 = scalar_lea.vmem [#allocation7], %s403
          %406 = dma.done %s402, 16
        $region48: #{tpu_custom_call.1} parent=43 // pred_fallthru
          _
      $region44: #{tpu_custom_call.1} parent=5 // pred_fallthru
        _
    $region6: #{tpu_custom_call.1} parent=1 // loop_footer
      %s21 = sadd.s32 1, %s17
    $region7: #{tpu_custom_call.1} parent=1 // loop_footer_branch
      %16 = sbr.rel target = $region3
    $region8: #{tpu_custom_call.1} parent=1 // loop_exit
      _
    %407 = vsyncpa [#allocation3], 1
    %s408 = scalar_lea.sflag [#allocation3], 1
    %409 = vsyncpa %s408, 1
    %410 = vsyncpa [#allocation6], 1
    %s411 = scalar_lea.sflag [#allocation6], 1
    %412 = vsyncpa %s411, 1
    %413 = vsyncpa [#allocation4], 1
    %s414 = scalar_lea.sflag [#allocation4], 1
    %415 = vsyncpa %s414, 1

</llo_original>
